<compile_context>
chip_gen: v6e
topology: v6e:2x2x1
jax: 0.10.0
libtpu: 0.0.40
codegen_flags: <defaults>
</compile_context>

<pallas_src>
import functools
import warnings

import jax
import jax.numpy as jnp
from jax.experimental import pallas as pl
from jax.experimental.pallas import tpu as pltpu


def _round_up(n, m):
    return ((n + m - 1) // m) * m


def _round_down(n, m):
    return (n // m) * m


def _sublane(itemsize):
    # Sublane tiling (second-to-last dim) of a VMEM vreg per element width.
    return {1: 32, 2: 16, 4: 8}.get(int(itemsize), 8)


def _tpu_hw():
    """Returns (physical VMEM bytes, #TensorCores that share the grid)."""
    vmem = None
    try:
        info = pltpu.get_tpu_info()
        vmem = int(getattr(info, "vmem_capacity_bytes", 0)) or None
    except Exception:
        vmem = None
    kind = ""
    try:
        kind = jax.devices()[0].device_kind.lower()
    except Exception:
        pass
    is_v7 = ("v7" in kind) or ("7x" in kind)
    if vmem is None:
        vmem = (64 << 20) if is_v7 else (128 << 20)
    num_tc = 2 if is_v7 else 1
    return int(vmem), num_tc


def _critic_kernel(x_ref, w1_ref, b1_ref, w2_ref, b2_ref, o_ref, *, compute_dtype):
    # Layer 1: (block_b, D) @ (D, H) on the MXU, f32 accumulation.
    x = x_ref[...].astype(compute_dtype)
    w1 = w1_ref[...].astype(compute_dtype)
    h = jnp.dot(x, w1, preferred_element_type=jnp.float32)        # (block_b, H) f32
    h = jnp.maximum(h + b1_ref[...], 0.0)                         # bias + ReLU (VPU, f32)

    # Layer 2: contract hidden of w2 (1, H) against hidden of h (block_b, H).
    # Produces a lane-dense (1, block_b) row -> unmasked full-width store.
    v = jax.lax.dot_general(
        w2_ref[...], h,
        dimension_numbers=(((1,), (1,)), ((), ())),
        preferred_element_type=jnp.float32)                       # (1, block_b)
    o_ref[...] = (v + b2_ref[0, 0]).astype(o_ref.dtype)


@functools.partial(jax.jit, static_argnames=("block_b_cap", "compute_dtype"))
def critic_forward(x, w1, b1, w2, b2, *, block_b_cap=2048, compute_dtype=jnp.float32):
    batch, input_dim = x.shape
    hidden_dim = w1.shape[1]

    if (jnp.dtype(compute_dtype) == jnp.dtype(jnp.bfloat16)
            and (x.dtype == jnp.float32 or w1.dtype == jnp.float32)):
        warnings.warn(
            "compute_dtype=bfloat16 with float32 inputs: the in-kernel downcast "
            "changes numerics and saves no HBM bandwidth. Pass x / w1 already in "
            "bfloat16 for the intended ~2x bandwidth win.")

    vmem_cap, num_tc = _tpu_hw()
    # Usable VMEM: leave internal-scratch headroom (>=16 MiB or 1/4 of capacity).
    #   v5e/v6e: 128 MiB -> ~96 MiB;  v7x: 64 MiB -> ~48 MiB.
    vmem_budget = vmem_cap - min(32 << 20, vmem_cap // 4)

    x_item = jnp.dtype(x.dtype).itemsize
    w1_item = jnp.dtype(w1.dtype).itemsize

    # Lane/sublane-PADDED footprints (VMEM stores (sublane,128)-tiled layouts).
    d_pad = _round_up(input_dim, 128)
    h_pad = _round_up(hidden_dim, 128)
    w1_vmem = _round_up(input_dim, _sublane(w1_item)) * h_pad * w1_item
    b1_vmem = 8 * h_pad * 4
    w2_vmem = 8 * h_pad * 4
    resident = w1_vmem + b1_vmem + w2_vmem            # single-buffered (Buffered(1))

    # Per-batch-row VMEM: double-buffered x tile, f32 hidden activations,
    # cast/temp headroom, double-buffered (8-sublane padded) output slab.
    per_row = (2 * d_pad * x_item) + (h_pad * 4) + (d_pad * 4) + (2 * 8 * 4)
    fixed_headroom = 2 << 20

    rows_from_budget = max((vmem_budget - resident - fixed_headroom) // per_row, 128)
    max_tile = max(min(_round_down(rows_from_budget, 128), _round_up(block_b_cap, 128)), 128)

    # Batch-tile selection.
    if batch <= 128:
        block_b_eff = _round_up(max(batch, 1), _sublane(x_item))
        num_blocks = 1
    else:
        block_b_eff = min(max_tile, _round_up(batch, 128))
        if num_tc >= 2 and batch >= 256:
            # Keep >= 2 grid blocks so both v7x TensorCores get work.
            half = _round_up(pl.cdiv(batch, 2), 128)
            block_b_eff = min(block_b_eff, half)
        block_b_eff = max(block_b_eff, 128)
        num_blocks = pl.cdiv(batch, block_b_eff)
    padded_batch = num_blocks * block_b_eff

    needed = resident + per_row * block_b_eff + fixed_headroom
    vmem_limit = int(min(max(needed, 32 << 20), vmem_budget))

    const2 = lambda i: (0, 0)

    def _resident_spec(shape):
        # Constant-index weights/biases never change across the grid: request a
        # single VMEM buffer instead of the default double-buffer.
        try:
            return pl.BlockSpec(shape, const2, pipeline_mode=pl.Buffered(1))
        except Exception:  # older pallas without pipeline_mode / Buffered
            return pl.BlockSpec(shape, const2)

    kernel = functools.partial(_critic_kernel, compute_dtype=compute_dtype)

    out_row = pl.pallas_call(
        kernel,
        out_shape=jax.ShapeDtypeStruct((1, padded_batch), jnp.float32),
        grid_spec=pltpu.PrefetchScalarGridSpec(
            num_scalar_prefetch=0,
            grid=(num_blocks,),
            in_specs=[
                # x: tiled over batch (partial last block reads padded rows;
                # safe because rows are independent and padding is sliced off).
                pl.BlockSpec((block_b_eff, input_dim), lambda i: (i, 0)),
                # resident params: whole array, same block every step, 1 buffer.
                _resident_spec((input_dim, hidden_dim)),
                _resident_spec((1, hidden_dim)),
                _resident_spec((1, hidden_dim)),
                # b2: scalar in SMEM (no padded VMEM tile, no extra DMA stream).
                pl.BlockSpec(memory_space=pltpu.MemorySpace.SMEM),
            ],
            # Lane-dense output: batch along lanes, one (1, block_b) slab / step.
            out_specs=pl.BlockSpec((1, block_b_eff), lambda i: (0, i)),
        ),
        compiler_params=pltpu.CompilerParams(
            dimension_semantics=("parallel",),
            vmem_limit_bytes=vmem_limit),
    )(x, w1, b1, w2, b2)

    # (1, padded_batch) lane-dense slab -> (batch, 1), dropping padding.
    return out_row[0, :batch].reshape(batch, 1)


def init_critic_params(key, input_dim, hidden_dim):
    """Deterministic init mimicking nn.Linear's U(-1/sqrt(fan_in), 1/sqrt(fan_in))."""
    k1, k2, k3, k4 = jax.random.split(key, 4)
    bound1 = 1.0 / jnp.sqrt(jnp.float32(input_dim))
    bound2 = 1.0 / jnp.sqrt(jnp.float32(hidden_dim))
    w1 = jax.random.uniform(k1, (input_dim, hidden_dim), jnp.float32, -bound1, bound1)
    b1 = jax.random.uniform(k2, (1, hidden_dim), jnp.float32, -bound1, bound1)
    w2 = jax.random.uniform(k3, (1, hidden_dim), jnp.float32, -bound2, bound2)
    b2 = jax.random.uniform(k4, (1, 1), jnp.float32, -bound2, bound2)
    return w1, b1, w2, b2


if __name__ == "__main__":
    input_dim, hidden_dim, batch = 16, 32, 256

    key = jax.random.PRNGKey(0)
    kx, kp = jax.random.split(key)
    x = jax.random.normal(kx, (batch, input_dim), jnp.float32)
    w1, b1, w2, b2 = init_critic_params(kp, input_dim, hidden_dim)

    # f32 path (bit-level parity with the PyTorch reference).
    out = jax.block_until_ready(critic_forward(x, w1, b1, w2, b2))
    ref = jnp.maximum(x @ w1 + b1, 0.0) @ w2.T + b2
    assert out.shape == (batch, 1)
    assert jnp.allclose(out, ref, atol=1e-5, rtol=1e-5)

    # Non-multiple-of-128 batch exercises the partial last block.
    x_odd = x[:200]
    out_odd = jax.block_until_ready(critic_forward(x_odd, w1, b1, w2, b2))
    ref_odd = jnp.maximum(x_odd @ w1 + b1, 0.0) @ w2.T + b2
    assert out_odd.shape == (200, 1)
    assert jnp.allclose(out_odd, ref_odd, atol=1e-5, rtol=1e-5)

    # Recommended production path: x / w1 stored in bf16 (halves the dominant
    # HBM stream); accumulation, bias and ReLU stay f32 inside the kernel.
    x_bf16 = x.astype(jnp.bfloat16)
    w1_bf16 = w1.astype(jnp.bfloat16)
    out_bf16 = jax.block_until_ready(
        critic_forward(x_bf16, w1_bf16, b1, w2, b2, compute_dtype=jnp.bfloat16))
    ref_bf16 = (jnp.maximum(x_bf16.astype(jnp.float32) @ w1_bf16.astype(jnp.float32)
                            + b1, 0.0) @ w2.T + b2)
    assert out_bf16.shape == (batch, 1)
    assert jnp.allclose(out_bf16, ref_bf16, atol=2e-2, rtol=2e-2)

    print("KERNEL_OK")
</pallas_src>

<mosaic_0001>
module attributes {stable_mosaic.version = 11 : i64} {
  func.func @_critic_kernel(%arg0: i32, %arg1: memref<256x16xf32, #tpu.memory_space<vmem>>, %arg2: memref<16x32xf32, #tpu.memory_space<vmem>>, %arg3: memref<1x32xf32, #tpu.memory_space<vmem>>, %arg4: memref<1x32xf32, #tpu.memory_space<vmem>>, %arg5: memref<1x1xf32, #tpu.memory_space<smem>>, %arg6: memref<1x256xf32, #tpu.memory_space<vmem>>) attributes {dimension_semantics = [#tpu.dimension_semantics<parallel>], iteration_bounds = array<i64: 1>, scalar_prefetch = 0 : i64, scratch_operands = 0 : i64, tpu.core_type = #tpu.core_type<tc>, window_params = [{transform_indices = @transform_0, window_bounds = array<i64: 256, 16>}, {pipeline_mode = #tpu.pipeline_mode<synchronous>, transform_indices = @transform_1, window_bounds = array<i64: 16, 32>}, {pipeline_mode = #tpu.pipeline_mode<synchronous>, transform_indices = @transform_2, window_bounds = array<i64: 1, 32>}, {pipeline_mode = #tpu.pipeline_mode<synchronous>, transform_indices = @transform_3, window_bounds = array<i64: 1, 32>}, {transform_indices = @transform_4, window_bounds = array<i64: 1, 1>}, {transform_indices = @transform_5, window_bounds = array<i64: 1, 256>}]} {
    %c0 = arith.constant 0 : index
    %c0_0 = arith.constant 0 : index
    %0 = vector.load %arg1[%c0, %c0_0] : memref<256x16xf32, #tpu.memory_space<vmem>>, vector<256x16xf32>
    %c0_1 = arith.constant 0 : index
    %c0_2 = arith.constant 0 : index
    %1 = vector.load %arg2[%c0_1, %c0_2] : memref<16x32xf32, #tpu.memory_space<vmem>>, vector<16x32xf32>
    %cst = arith.constant dense<0.000000e+00> : vector<256x32xf32>
    %2 = tpu.matmul %0, %1, %cst {dimension_numbers = #tpu.dot_dimension_numbers<[1], [0], [0], [1], [0, 0, 1, 1], [], []>} : vector<256x16xf32>, vector<16x32xf32>, vector<256x32xf32> -> vector<256x32xf32>
    %c0_3 = arith.constant 0 : index
    %c0_4 = arith.constant 0 : index
    %3 = vector.load %arg3[%c0_3, %c0_4] : memref<1x32xf32, #tpu.memory_space<vmem>>, vector<1x32xf32>
    %4 = vector.broadcast %3 : vector<1x32xf32> to vector<256x32xf32>
    %5 = arith.addf %2, %4 : vector<256x32xf32>
    %cst_5 = arith.constant 0.000000e+00 : f32
    %6 = vector.broadcast %cst_5 : f32 to vector<256x32xf32>
    %7 = arith.maximumf %5, %6 : vector<256x32xf32>
    %c0_6 = arith.constant 0 : index
    %c0_7 = arith.constant 0 : index
    %8 = vector.load %arg4[%c0_6, %c0_7] : memref<1x32xf32, #tpu.memory_space<vmem>>, vector<1x32xf32>
    %cst_8 = arith.constant dense<0.000000e+00> : vector<1x256xf32>
    %9 = tpu.matmul %8, %7, %cst_8 {dimension_numbers = #tpu.dot_dimension_numbers<[1], [1], [0], [0], [0, 0, 1, 0], [], []>} : vector<1x32xf32>, vector<256x32xf32>, vector<1x256xf32> -> vector<1x256xf32>
    %c0_9 = arith.constant 0 : index
    %c0_10 = arith.constant 0 : index
    %10 = memref.load %arg5[%c0_9, %c0_10] : memref<1x1xf32, #tpu.memory_space<smem>>
    %11 = vector.broadcast %10 : f32 to vector<1x256xf32>
    %12 = arith.addf %9, %11 : vector<1x256xf32>
    %c0_11 = arith.constant 0 : index
    %c0_12 = arith.constant 0 : index
    %13 = vector.load %arg6[%c0_11, %c0_12] : memref<1x256xf32, #tpu.memory_space<vmem>>, vector<1x256xf32>
    tpu.vector_store %arg6[%c0_11, %c0_12], %12 {strides = array<i32>} : memref<1x256xf32, #tpu.memory_space<vmem>>, vector<1x256xf32>,
    return
  }
  func.func @transform_0(%arg0: i32) -> (i32, i32) {
    %c0_i32 = arith.constant 0 : i32
    %c0_i32_0 = arith.constant 0 : i32
    return %arg0, %c0_i32 : i32, i32
  }
  func.func @transform_1(%arg0: i32) -> (i32, i32) {
    %c0_i32 = arith.constant 0 : i32
    %c0_i32_0 = arith.constant 0 : i32
    %c0_i32_1 = arith.constant 0 : i32
    return %c0_i32, %c0_i32_0 : i32, i32
  }
  func.func @transform_2(%arg0: i32) -> (i32, i32) {
    %c0_i32 = arith.constant 0 : i32
    %c0_i32_0 = arith.constant 0 : i32
    %c0_i32_1 = arith.constant 0 : i32
    return %c0_i32, %c0_i32_0 : i32, i32
  }
  func.func @transform_3(%arg0: i32) -> (i32, i32) {
    %c0_i32 = arith.constant 0 : i32
    %c0_i32_0 = arith.constant 0 : i32
    %c0_i32_1 = arith.constant 0 : i32
    return %c0_i32, %c0_i32_0 : i32, i32
  }
  func.func @transform_4(%arg0: i32) -> (i32, i32) {
    %c0_i32 = arith.constant 0 : i32
    %c0_i32_0 = arith.constant 0 : i32
    %c0_i32_1 = arith.constant 0 : i32
    return %c0_i32, %c0_i32_0 : i32, i32
  }
  func.func @transform_5(%arg0: i32) -> (i32, i32) {
    %c0_i32 = arith.constant 0 : i32
    %c0_i32_0 = arith.constant 0 : i32
    return %c0_i32, %arg0 : i32, i32
  }
}

</mosaic_0001>

<llo_original>
// kernel: critic_forward.1
$region0: #{critic_forward.1}
  #allocation0 [shape = 'u32[]', space=smem, size = 0x4, offset = 0x4, fixed_abs, tag = 'smem constant byte address 0x4 - core index']
  #allocation1 [shape = 'u32[144,128]{1,0:T(1,128)}', space=vmem, size = 0x12000, scoped, tag = 'internal scratch']
  #allocation2 [shape = 'f32[1,1]{1,0:T(1,128)S(6)}', space=smem, size = 0x200, scoped, tag = 'scoped memory for critic_forward.1']
  %s0 = inlined_call_operand.vmem [shape: f32[256,16], index: 0, kind: input, shape index: {}]
  %s1 = inlined_call_operand.vmem [shape: f32[16,32], index: 1, kind: input, shape index: {}]
  %s2 = inlined_call_operand.vmem [shape: f32[1,32], index: 2, kind: input, shape index: {}]
  %s3 = inlined_call_operand.vmem [shape: f32[1,32], index: 3, kind: input, shape index: {}]
  %s4 = inlined_call_operand.<no memory space> [shape: f32[1,1], index: 4, kind: input, shape index: {}]
  %s5 = inlined_call_operand.hbm [shape: f32[1,256], index: 5, kind: output, shape index: {}]
  %s6 = sld [smem:[#allocation0]]
  $region30: #{critic_forward.1} parent=0
    _
  %s8 = ssub.s32 1, %s6
  %s9 = scalar_select 0, %s8, %s6
  %10 = sst [smem:[#allocation2]] %s4
  $region1: #{critic_forward.1} parent=0
    #allocation3 [shape = 'u8[1024]{0}', space=vmem, size = 0x400, scoped, tag = 'output window, operand 0, single buffered']
    #allocation4 [shape = 's32[1]{0}', space=sflag, size = 0x4, scoped, tag = 'scoped memory for critic_forward.1']
    %11 = vsyncpa [#allocation4], 0
    // Predicated region
    $region2: #{critic_forward.1} parent=1 // pred_check
      _
    $region3: #{critic_forward.1} parent=1 // pred_check_branch
      %13 = sbr.rel (0) target = $region5
    $region4: #{critic_forward.1} parent=1 // pred_region
      _
    $region5: #{critic_forward.1} parent=1 // pred_fallthru
      _
    // Predicated region
    $region6: #{critic_forward.1} parent=1 // pred_check
      _
    $region7: #{critic_forward.1} parent=1 // pred_check_branch
      %15 = sbr.rel (0) target = $region9
    $region8: #{critic_forward.1} parent=1 // pred_region
      _
    $region9: #{critic_forward.1} parent=1 // pred_fallthru
      _
    // Predicated region
    $region10: #{critic_forward.1} parent=1 // pred_check
      _
    $region11: #{critic_forward.1} parent=1 // pred_check_branch
      %17 = sbr.rel (0) target = $region13
    $region12: #{critic_forward.1} parent=1 // pred_region
      _
    $region13: #{critic_forward.1} parent=1 // pred_fallthru
      _
    // Predicated region
    $region14: #{critic_forward.1} parent=1 // pred_check
      _
    $region15: #{critic_forward.1} parent=1 // pred_check_branch
      %19 = sbr.rel (0) target = $region17
    $region16: #{critic_forward.1} parent=1 // pred_region
      _
    $region17: #{critic_forward.1} parent=1 // pred_fallthru
      _
    // Predicated region
    $region18: #{critic_forward.1} parent=1 // pred_check
      _
    $region19: #{critic_forward.1} parent=1 // pred_check_branch
      %21 = sbr.rel (0) target = $region21
    $region20: #{critic_forward.1} parent=1 // pred_region
      _
    $region21: #{critic_forward.1} parent=1 // pred_fallthru
      _
    %v22 = vld [vmem:[%s0] sm:$0xff]
    %v23 = vld [vmem:[%s0 + $0x8] sm:$0xff]
    %v24 = vld [vmem:[%s0 + $0x10] sm:$0xff]
    %v25 = vld [vmem:[%s0 + $0x18] sm:$0xff]
    %v26 = vld [vmem:[%s0 + $0x20] sm:$0xff]
    %v27 = vld [vmem:[%s0 + $0x28] sm:$0xff]
    %v28 = vld [vmem:[%s0 + $0x30] sm:$0xff]
    %v29 = vld [vmem:[%s0 + $0x38] sm:$0xff]
    %v30 = vld [vmem:[%s0 + $0x40] sm:$0xff]
    %v31 = vld [vmem:[%s0 + $0x48] sm:$0xff]
    %v32 = vld [vmem:[%s0 + $0x50] sm:$0xff]
    %v33 = vld [vmem:[%s0 + $0x58] sm:$0xff]
    %v34 = vld [vmem:[%s0 + $0x60] sm:$0xff]
    %v35 = vld [vmem:[%s0 + $0x68] sm:$0xff]
    %v36 = vld [vmem:[%s0 + $0x70] sm:$0xff]
    %v37 = vld [vmem:[%s0 + $0x78] sm:$0xff]
    %v38 = vld [vmem:[%s0 + $0x80] sm:$0xff]
    %v39 = vld [vmem:[%s0 + $0x88] sm:$0xff]
    %v40 = vld [vmem:[%s0 + $0x90] sm:$0xff]
    %v41 = vld [vmem:[%s0 + $0x98] sm:$0xff]
    %v42 = vld [vmem:[%s0 + $0xa0] sm:$0xff]
    %v43 = vld [vmem:[%s0 + $0xa8] sm:$0xff]
    %v44 = vld [vmem:[%s0 + $0xb0] sm:$0xff]
    %v45 = vld [vmem:[%s0 + $0xb8] sm:$0xff]
    %v46 = vld [vmem:[%s0 + $0xc0] sm:$0xff]
    %v47 = vld [vmem:[%s0 + $0xc8] sm:$0xff]
    %v48 = vld [vmem:[%s0 + $0xd0] sm:$0xff]
    %v49 = vld [vmem:[%s0 + $0xd8] sm:$0xff]
    %v50 = vld [vmem:[%s0 + $0xe0] sm:$0xff]
    %v51 = vld [vmem:[%s0 + $0xe8] sm:$0xff]
    %v52 = vld [vmem:[%s0 + $0xf0] sm:$0xff]
    %v53 = vld [vmem:[%s0 + $0xf8] sm:$0xff]
    %v54 = vld [vmem:[%s1] sm:$0xff]
    %v55 = vld [vmem:[%s1 + $0x8] sm:$0xff]
    %v56 = vld [vmem:[%s2] sm:$0x1]
    %v58 = vlaneseq
    %v59 = vshrl.u32 %v58, 7
    %v60 = vsub.s32 0, %v59
    %v61 = vrot.slane %v56, %v60
    %vm63 = vcmask 130048
    %v65 = vsel %vm63, %v22, 0
    %v68 = vsel %vm63, %v23, 0
    %v71 = vsel %vm63, %v24, 0
    %v74 = vsel %vm63, %v25, 0
    %v77 = vsel %vm63, %v26, 0
    %v80 = vsel %vm63, %v27, 0
    %v83 = vsel %vm63, %v28, 0
    %v86 = vsel %vm63, %v29, 0
    %v89 = vsel %vm63, %v30, 0
    %v92 = vsel %vm63, %v31, 0
    %v95 = vsel %vm63, %v32, 0
    %v98 = vsel %vm63, %v33, 0
    %v101 = vsel %vm63, %v34, 0
    %v104 = vsel %vm63, %v35, 0
    %v107 = vsel %vm63, %v36, 0
    %v110 = vsel %vm63, %v37, 0
    %v113 = vsel %vm63, %v38, 0
    %v116 = vsel %vm63, %v39, 0
    %v119 = vsel %vm63, %v40, 0
    %v122 = vsel %vm63, %v41, 0
    %v125 = vsel %vm63, %v42, 0
    %v128 = vsel %vm63, %v43, 0
    %v131 = vsel %vm63, %v44, 0
    %v134 = vsel %vm63, %v45, 0
    %v137 = vsel %vm63, %v46, 0
    %v140 = vsel %vm63, %v47, 0
    %v143 = vsel %vm63, %v48, 0
    %v146 = vsel %vm63, %v49, 0
    %v149 = vsel %vm63, %v50, 0
    %v152 = vsel %vm63, %v51, 0
    %v155 = vsel %vm63, %v52, 0
    %v158 = vsel %vm63, %v53, 0
    %160 = vmatprep.subr.mxu0 0.0
    %161 = vmatpush1.msra.mxu0 0.0
    %162 = vmatprep.subr.mxu0 0.0
    %163 = vmatpush1.msra.mxu0 0.0
    %164 = vmatprep.subr.mxu0 0.0
    %165 = vmatpush1.msra.mxu0 0.0
    %166 = vmatprep.subr.mxu0 0.0
    %167 = vmatpush1.msra.mxu0 0.0
    %168 = vmatprep.subr.mxu0 0.0
    %169 = vmatpush1.msra.mxu0 0.0
    %170 = vmatprep.subr.mxu0 0.0
    %171 = vmatpush1.msra.mxu0 0.0
    %172 = vmatprep.subr.mxu0 0.0
    %173 = vmatpush1.msra.mxu0 0.0
    %174 = vmatprep.subr.mxu0 0.0
    %175 = vmatpush1.msra.mxu0 0.0
    %176 = vmatprep.subr.mxu0 0.0
    %177 = vmatpush1.msra.mxu0 0.0
    %178 = vmatprep.subr.mxu0 0.0
    %179 = vmatpush1.msra.mxu0 0.0
    %180 = vmatprep.subr.mxu0 0.0
    %181 = vmatpush1.msra.mxu0 0.0
    %182 = vmatprep.subr.mxu0 0.0
    %183 = vmatpush1.msra.mxu0 0.0
    %184 = vmatprep.subr.mxu0 0.0
    %185 = vmatpush1.msra.mxu0 0.0
    %186 = vmatprep.subr.mxu0 0.0
    %187 = vmatpush1.msra.mxu0 0.0
    %188 = vmatprep.subr.mxu0 0.0
    %189 = vmatpush1.msra.mxu0 %v55
    %190 = vmatprep.subr.mxu0 0.0
    %191 = vmatpush1.msra.mxu0 %v54
    %192 = vmatprep.subr.mxu0 0.0
    %193 = vmatpush2.msra.mxu0 0.0
    %194 = vmatprep.subr.mxu0 0.0
    %195 = vmatpush2.msra.mxu0 0.0
    %196 = vmatprep.subr.mxu0 0.0
    %197 = vmatpush2.msra.mxu0 0.0
    %198 = vmatprep.subr.mxu0 0.0
    %199 = vmatpush2.msra.mxu0 0.0
    %200 = vmatprep.subr.mxu0 0.0
    %201 = vmatpush2.msra.mxu0 0.0
    %202 = vmatprep.subr.mxu0 0.0
    %203 = vmatpush2.msra.mxu0 0.0
    %204 = vmatprep.subr.mxu0 0.0
    %205 = vmatpush2.msra.mxu0 0.0
    %206 = vmatprep.subr.mxu0 0.0
    %207 = vmatpush2.msra.mxu0 0.0
    %208 = vmatprep.subr.mxu0 0.0
    %209 = vmatpush2.msra.mxu0 0.0
    %210 = vmatprep.subr.mxu0 0.0
    %211 = vmatpush2.msra.mxu0 0.0
    %212 = vmatprep.subr.mxu0 0.0
    %213 = vmatpush2.msra.mxu0 0.0
    %214 = vmatprep.subr.mxu0 0.0
    %215 = vmatpush2.msra.mxu0 0.0
    %216 = vmatprep.subr.mxu0 0.0
    %217 = vmatpush2.msra.mxu0 0.0
    %218 = vmatprep.subr.mxu0 0.0
    %219 = vmatpush2.msra.mxu0 0.0
    %220 = vmatprep.subr.mxu0 0.0
    %221 = vmatpush2.msra.mxu0 0.0
    %222 = vmatprep.subr.mxu0 0.0
    %223 = vmatpush2.msra.mxu0 0.0
    %224 = vmatprep.mubr.f32.mxu0 0.0
    %225 = vmatmul.mubr.f32.gmra.mxu0 %v65
    %v226 = vpop.f32.mrf.mxu0
    %v227 = vadd.f32 %v61, %v226
    %v228 = vpop.f32.mrf.mxu0
    %229 = vmatprep.mubr.f32.mxu0 0.0
    %230 = vmatmul.mubr.f32.gmra.mxu0 %v68
    %v231 = vpop.f32.mrf.mxu0
    %v232 = vadd.f32 %v61, %v231
    %v233 = vpop.f32.mrf.mxu0
    %234 = vmatprep.mubr.f32.mxu0 0.0
    %235 = vmatmul.mubr.f32.gmra.mxu0 %v71
    %v236 = vpop.f32.mrf.mxu0
    %v237 = vadd.f32 %v61, %v236
    %v238 = vpop.f32.mrf.mxu0
    %239 = vmatprep.mubr.f32.mxu0 0.0
    %240 = vmatmul.mubr.f32.gmra.mxu0 %v74
    %v241 = vpop.f32.mrf.mxu0
    %v242 = vadd.f32 %v61, %v241
    %v243 = vpop.f32.mrf.mxu0
    %244 = vmatprep.mubr.f32.mxu0 0.0
    %245 = vmatmul.mubr.f32.gmra.mxu0 %v77
    %v246 = vpop.f32.mrf.mxu0
    %v247 = vadd.f32 %v61, %v246
    %v248 = vpop.f32.mrf.mxu0
    %249 = vmatprep.mubr.f32.mxu0 0.0
    %250 = vmatmul.mubr.f32.gmra.mxu0 %v80
    %v251 = vpop.f32.mrf.mxu0
    %v252 = vadd.f32 %v61, %v251
    %v253 = vpop.f32.mrf.mxu0
    %254 = vmatprep.mubr.f32.mxu0 0.0
    %255 = vmatmul.mubr.f32.gmra.mxu0 %v83
    %v256 = vpop.f32.mrf.mxu0
    %v257 = vadd.f32 %v61, %v256
    %v258 = vpop.f32.mrf.mxu0
    %259 = vmatprep.mubr.f32.mxu0 0.0
    %260 = vmatmul.mubr.f32.gmra.mxu0 %v86
    %v261 = vpop.f32.mrf.mxu0
    %v262 = vadd.f32 %v61, %v261
    %v263 = vpop.f32.mrf.mxu0
    %264 = vmatprep.mubr.f32.mxu0 0.0
    %265 = vmatmul.mubr.f32.gmra.mxu0 %v89
    %v266 = vpop.f32.mrf.mxu0
    %v267 = vadd.f32 %v61, %v266
    %v268 = vpop.f32.mrf.mxu0
    %269 = vmatprep.mubr.f32.mxu0 0.0
    %270 = vmatmul.mubr.f32.gmra.mxu0 %v92
    %v271 = vpop.f32.mrf.mxu0
    %v272 = vadd.f32 %v61, %v271
    %v273 = vpop.f32.mrf.mxu0
    %274 = vmatprep.mubr.f32.mxu0 0.0
    %275 = vmatmul.mubr.f32.gmra.mxu0 %v95
    %v276 = vpop.f32.mrf.mxu0
    %v277 = vadd.f32 %v61, %v276
    %v278 = vpop.f32.mrf.mxu0
    %279 = vmatprep.mubr.f32.mxu0 0.0
    %280 = vmatmul.mubr.f32.gmra.mxu0 %v98
    %v281 = vpop.f32.mrf.mxu0
    %v282 = vadd.f32 %v61, %v281
    %v283 = vpop.f32.mrf.mxu0
    %284 = vmatprep.mubr.f32.mxu0 0.0
    %285 = vmatmul.mubr.f32.gmra.mxu0 %v101
    %v286 = vpop.f32.mrf.mxu0
    %v287 = vadd.f32 %v61, %v286
    %v288 = vpop.f32.mrf.mxu0
    %289 = vmatprep.mubr.f32.mxu0 0.0
    %290 = vmatmul.mubr.f32.gmra.mxu0 %v104
    %v291 = vpop.f32.mrf.mxu0
    %v292 = vadd.f32 %v61, %v291
    %v293 = vpop.f32.mrf.mxu0
    %294 = vmatprep.mubr.f32.mxu0 0.0
    %295 = vmatmul.mubr.f32.gmra.mxu0 %v107
    %v296 = vpop.f32.mrf.mxu0
    %v297 = vadd.f32 %v61, %v296
    %v298 = vpop.f32.mrf.mxu0
    %299 = vmatprep.mubr.f32.mxu0 0.0
    %300 = vmatmul.mubr.f32.gmra.mxu0 %v110
    %v301 = vpop.f32.mrf.mxu0
    %v302 = vadd.f32 %v61, %v301
    %v303 = vpop.f32.mrf.mxu0
    %304 = vmatprep.mubr.f32.mxu0 0.0
    %305 = vmatmul.mubr.f32.gmra.mxu0 %v113
    %v306 = vpop.f32.mrf.mxu0
    %v307 = vadd.f32 %v61, %v306
    %v308 = vpop.f32.mrf.mxu0
    %309 = vmatprep.mubr.f32.mxu0 0.0
    %310 = vmatmul.mubr.f32.gmra.mxu0 %v116
    %v311 = vpop.f32.mrf.mxu0
    %v312 = vadd.f32 %v61, %v311
    %v313 = vpop.f32.mrf.mxu0
    %314 = vmatprep.mubr.f32.mxu0 0.0
    %315 = vmatmul.mubr.f32.gmra.mxu0 %v119
    %v316 = vpop.f32.mrf.mxu0
    %v317 = vadd.f32 %v61, %v316
    %v318 = vpop.f32.mrf.mxu0
    %319 = vmatprep.mubr.f32.mxu0 0.0
    %320 = vmatmul.mubr.f32.gmra.mxu0 %v122
    %v321 = vpop.f32.mrf.mxu0
    %v322 = vadd.f32 %v61, %v321
    %v323 = vpop.f32.mrf.mxu0
    %324 = vmatprep.mubr.f32.mxu0 0.0
    %325 = vmatmul.mubr.f32.gmra.mxu0 %v125
    %v326 = vpop.f32.mrf.mxu0
    %v327 = vadd.f32 %v61, %v326
    %v328 = vpop.f32.mrf.mxu0
    %329 = vmatprep.mubr.f32.mxu0 0.0
    %330 = vmatmul.mubr.f32.gmra.mxu0 %v128
    %v331 = vpop.f32.mrf.mxu0
    %v332 = vadd.f32 %v61, %v331
    %v333 = vpop.f32.mrf.mxu0
    %334 = vmatprep.mubr.f32.mxu0 0.0
    %335 = vmatmul.mubr.f32.gmra.mxu0 %v131
    %v336 = vpop.f32.mrf.mxu0
    %v337 = vadd.f32 %v61, %v336
    %v338 = vpop.f32.mrf.mxu0
    %339 = vmatprep.mubr.f32.mxu0 0.0
    %340 = vmatmul.mubr.f32.gmra.mxu0 %v134
    %v341 = vpop.f32.mrf.mxu0
    %v342 = vadd.f32 %v61, %v341
    %v343 = vpop.f32.mrf.mxu0
    %344 = vmatprep.mubr.f32.mxu0 0.0
    %345 = vmatmul.mubr.f32.gmra.mxu0 %v137
    %v346 = vpop.f32.mrf.mxu0
    %v347 = vadd.f32 %v61, %v346
    %v348 = vpop.f32.mrf.mxu0
    %349 = vmatprep.mubr.f32.mxu0 0.0
    %350 = vmatmul.mubr.f32.gmra.mxu0 %v140
    %v351 = vpop.f32.mrf.mxu0
    %v352 = vadd.f32 %v61, %v351
    %v353 = vpop.f32.mrf.mxu0
    %354 = vmatprep.mubr.f32.mxu0 0.0
    %355 = vmatmul.mubr.f32.gmra.mxu0 %v143
    %v356 = vpop.f32.mrf.mxu0
    %v357 = vadd.f32 %v61, %v356
    %v358 = vpop.f32.mrf.mxu0
    %359 = vmatprep.mubr.f32.mxu0 0.0
    %360 = vmatmul.mubr.f32.gmra.mxu0 %v146
    %v361 = vpop.f32.mrf.mxu0
    %v362 = vadd.f32 %v61, %v361
    %v363 = vpop.f32.mrf.mxu0
    %364 = vmatprep.mubr.f32.mxu0 0.0
    %365 = vmatmul.mubr.f32.gmra.mxu0 %v149
    %v366 = vpop.f32.mrf.mxu0
    %v367 = vadd.f32 %v61, %v366
    %v368 = vpop.f32.mrf.mxu0
    %369 = vmatprep.mubr.f32.mxu0 0.0
    %370 = vmatmul.mubr.f32.gmra.mxu0 %v152
    %v371 = vpop.f32.mrf.mxu0
    %v372 = vadd.f32 %v61, %v371
    %v373 = vpop.f32.mrf.mxu0
    %374 = vmatprep.mubr.f32.mxu0 0.0
    %375 = vmatmul.mubr.f32.gmra.mxu0 %v155
    %v376 = vpop.f32.mrf.mxu0
    %v377 = vadd.f32 %v61, %v376
    %v378 = vpop.f32.mrf.mxu0
    %379 = vmatprep.mubr.f32.mxu0 0.0
    %380 = vmatmul.mubr.f32.gmra.mxu0 %v158
    %v381 = vpop.f32.mrf.mxu0
    %v382 = vadd.f32 %v61, %v381
    %v383 = vpop.f32.mrf.mxu0
    %384 = vdwg.mxu0
    %v385 = vmax.f32 %v227, 0.0
    %v386 = vmax.f32 %v232, 0.0
    %v387 = vmax.f32 %v237, 0.0
    %v388 = vmax.f32 %v242, 0.0
    %v389 = vmax.f32 %v247, 0.0
    %v390 = vmax.f32 %v252, 0.0
    %v391 = vmax.f32 %v257, 0.0
    %v392 = vmax.f32 %v262, 0.0
    %v393 = vmax.f32 %v267, 0.0
    %v394 = vmax.f32 %v272, 0.0
    %v395 = vmax.f32 %v277, 0.0
    %v396 = vmax.f32 %v282, 0.0
    %v397 = vmax.f32 %v287, 0.0
    %v398 = vmax.f32 %v292, 0.0
    %v399 = vmax.f32 %v297, 0.0
    %v400 = vmax.f32 %v302, 0.0
    %v401 = vmax.f32 %v307, 0.0
    %v402 = vmax.f32 %v312, 0.0
    %v403 = vmax.f32 %v317, 0.0
    %v404 = vmax.f32 %v322, 0.0
    %v405 = vmax.f32 %v327, 0.0
    %v406 = vmax.f32 %v332, 0.0
    %v407 = vmax.f32 %v337, 0.0
    %v408 = vmax.f32 %v342, 0.0
    %v409 = vmax.f32 %v347, 0.0
    %v410 = vmax.f32 %v352, 0.0
    %v411 = vmax.f32 %v357, 0.0
    %v412 = vmax.f32 %v362, 0.0
    %v413 = vmax.f32 %v367, 0.0
    %v414 = vmax.f32 %v372, 0.0
    %v415 = vmax.f32 %v377, 0.0
    %v416 = vmax.f32 %v382, 0.0
    %v417 = vld [vmem:[%s3] sm:$0x1]
    %s418 = sld [smem:[#allocation2]]
    %v419 = vstv %s418
    %vm420 = vcmask 261120
    %v422 = vsel %vm420, %v417, 0
    %v425 = vsel %vm420, %v385, 0
    %v428 = vsel %vm420, %v386, 0
    %v431 = vsel %vm420, %v387, 0
    %v434 = vsel %vm420, %v388, 0
    %v437 = vsel %vm420, %v389, 0
    %v440 = vsel %vm420, %v390, 0
    %v443 = vsel %vm420, %v391, 0
    %v446 = vsel %vm420, %v392, 0
    %v449 = vsel %vm420, %v393, 0
    %v452 = vsel %vm420, %v394, 0
    %v455 = vsel %vm420, %v395, 0
    %v458 = vsel %vm420, %v396, 0
    %v461 = vsel %vm420, %v397, 0
    %v464 = vsel %vm420, %v398, 0
    %v467 = vsel %vm420, %v399, 0
    %v470 = vsel %vm420, %v400, 0
    %v473 = vsel %vm420, %v401, 0
    %v476 = vsel %vm420, %v402, 0
    %v479 = vsel %vm420, %v403, 0
    %v482 = vsel %vm420, %v404, 0
    %v485 = vsel %vm420, %v405, 0
    %v488 = vsel %vm420, %v406, 0
    %v491 = vsel %vm420, %v407, 0
    %v494 = vsel %vm420, %v408, 0
    %v497 = vsel %vm420, %v409, 0
    %v500 = vsel %vm420, %v410, 0
    %v503 = vsel %vm420, %v411, 0
    %v506 = vsel %vm420, %v412, 0
    %v509 = vsel %vm420, %v413, 0
    %v512 = vsel %vm420, %v414, 0
    %v515 = vsel %vm420, %v415, 0
    %v518 = vsel %vm420, %v416, 0
    %520 = vmatprep.subr.mxu0 0.0
    %521 = vmatpush1.xpose.msra.mxu0 %v470
    %522 = vmatprep.subr.mxu0 0.0
    %523 = vmatpush1.xpose.msra.mxu0 %v467
    %524 = vmatprep.subr.mxu0 0.0
    %525 = vmatpush1.xpose.msra.mxu0 %v464
    %526 = vmatprep.subr.mxu0 0.0
    %527 = vmatpush1.xpose.msra.mxu0 %v461
    %528 = vmatprep.subr.mxu0 0.0
    %529 = vmatpush1.xpose.msra.mxu0 %v458
    %530 = vmatprep.subr.mxu0 0.0
    %531 = vmatpush1.xpose.msra.mxu0 %v455
    %532 = vmatprep.subr.mxu0 0.0
    %533 = vmatpush1.xpose.msra.mxu0 %v452
    %534 = vmatprep.subr.mxu0 0.0
    %535 = vmatpush1.xpose.msra.mxu0 %v449
    %536 = vmatprep.subr.mxu0 0.0
    %537 = vmatpush1.xpose.msra.mxu0 %v446
    %538 = vmatprep.subr.mxu0 0.0
    %539 = vmatpush1.xpose.msra.mxu0 %v443
    %540 = vmatprep.subr.mxu0 0.0
    %541 = vmatpush1.xpose.msra.mxu0 %v440
    %542 = vmatprep.subr.mxu0 0.0
    %543 = vmatpush1.xpose.msra.mxu0 %v437
    %544 = vmatprep.subr.mxu0 0.0
    %545 = vmatpush1.xpose.msra.mxu0 %v434
    %546 = vmatprep.subr.mxu0 0.0
    %547 = vmatpush1.xpose.msra.mxu0 %v431
    %548 = vmatprep.subr.mxu0 0.0
    %549 = vmatpush1.xpose.msra.mxu0 %v428
    %550 = vmatprep.subr.mxu0 0.0
    %551 = vmatpush1.xpose.msra.mxu0 %v425
    %552 = vmatprep.subr.mxu0 0.0
    %553 = vmatpush2.xpose.msra.mxu0 %v518
    %554 = vmatprep.subr.mxu0 0.0
    %555 = vmatpush2.xpose.msra.mxu0 %v515
    %556 = vmatprep.subr.mxu0 0.0
    %557 = vmatpush2.xpose.msra.mxu0 %v512
    %558 = vmatprep.subr.mxu0 0.0
    %559 = vmatpush2.xpose.msra.mxu0 %v509
    %560 = vmatprep.subr.mxu0 0.0
    %561 = vmatpush2.xpose.msra.mxu0 %v506
    %562 = vmatprep.subr.mxu0 0.0
    %563 = vmatpush2.xpose.msra.mxu0 %v503
    %564 = vmatprep.subr.mxu0 0.0
    %565 = vmatpush2.xpose.msra.mxu0 %v500
    %566 = vmatprep.subr.mxu0 0.0
    %567 = vmatpush2.xpose.msra.mxu0 %v497
    %568 = vmatprep.subr.mxu0 0.0
    %569 = vmatpush2.xpose.msra.mxu0 %v494
    %570 = vmatprep.subr.mxu0 0.0
    %571 = vmatpush2.xpose.msra.mxu0 %v491
    %572 = vmatprep.subr.mxu0 0.0
    %573 = vmatpush2.xpose.msra.mxu0 %v488
    %574 = vmatprep.subr.mxu0 0.0
    %575 = vmatpush2.xpose.msra.mxu0 %v485
    %576 = vmatprep.subr.mxu0 0.0
    %577 = vmatpush2.xpose.msra.mxu0 %v482
    %578 = vmatprep.subr.mxu0 0.0
    %579 = vmatpush2.xpose.msra.mxu0 %v479
    %580 = vmatprep.subr.mxu0 0.0
    %581 = vmatpush2.xpose.msra.mxu0 %v476
    %582 = vmatprep.subr.mxu0 0.0
    %583 = vmatpush2.xpose.msra.mxu0 %v473
    %584 = vmatprep.mubr.f32.mxu0 0.0
    %585 = vmatmul.mubr.f32.gmra.mxu0 %v422
    %v586 = vpop.f32.mrf.mxu0
    %v587 = vadd.f32 %v419, %v586
    %v588 = vpop.f32.mrf.mxu0
    %v589 = vadd.f32 %v419, %v588
    %590 = vdwg.mxu0
    %v593 = vcombine.low %v587, %v589
    %v595 = vunpack.c.l.s4 1966171168
    %v596 = vunpack.c.0.s8 %v595
    %v597 = vlaneseq
    %v598 = vshrl.u32 %v597, 7
    %v599 = vsub.s32 %v596, %v598
    %v600 = vrot.slane %v593, %v599
    %v602 = vunpack.c.l.s4 1966171168
    %v603 = vunpack.c.0.s8 %v602
    %v604 = vlaneseq
    %v605 = vshrl.u32 %v604, 7
    %v606 = vsub.s32 %v603, %v605
    %v607 = vrot.slane %v600, %v606
    %v609 = vlaneseq
    %vm610 = vcmp.ge.s32.totalorder %v609, 0
    %vm611 = vcmp.lt.s32.totalorder %v609, 256
    %vm612 = vmand %vm610, %vm611
    %613 = vst.msk [vmem:[#allocation3] sm:$0x3] %vm612, %v607
    // Predicated region
    $region22: #{critic_forward.1} parent=1 // pred_check
      _
    $region23: #{critic_forward.1} parent=1 // pred_check_branch
      %615 = sbr.rel (0) target = $region25
    $region24: #{critic_forward.1} parent=1 // pred_region
      %s617 = ssub.s32 32, 32
      %618 = vsyncadd [#allocation4], %s617
      %s620 = sshll.u32 [#allocation3], 4
      %s621 = int_to_ptr.vmem [resolvable:$true] %s620
      %623 = dma.vmem_to_hbm [thread:$0]  %s621, 32, %s5, [#allocation4]
    $region25: #{critic_forward.1} parent=1 // pred_fallthru
      _
    // Predicated region
    $region26: #{critic_forward.1} parent=1 // pred_check
      _
    $region27: #{critic_forward.1} parent=1 // pred_check_branch
      %625 = sbr.rel (0) target = $region29
    $region28: #{critic_forward.1} parent=1 // pred_region
      %626 = dma.done [#allocation4], 32
    $region29: #{critic_forward.1} parent=1 // pred_fallthru
      _
    %627 = vsyncpa [#allocation4], 1

</llo_original>
